<compile_context>
chip_gen: v7x
topology: tpu7x:2x2x1
jax: 0.10.0
libtpu: 0.0.40
codegen_flags: <defaults>
</compile_context>

<pallas_src>
import functools

import jax
import jax.numpy as jnp
from jax.experimental import pallas as pl
from jax.experimental.pallas import tpu as pltpu


def _round_up(x, m):
    return ((x + m - 1) // m) * m


def _pick_tiles(e, tile_e, chunk_e):
    """Clamp/align the edge tile: no gross over-padding for small E, the lane
    chunk divides the tile, and (when there is enough work) the grid has at
    least 2 steps so both v7x TensorCores get a share."""
    e128 = _round_up(e, 128)
    tile_e = max(128, min(_round_up(tile_e, 128), e128))
    if e128 >= 256 and e128 // tile_e < 2:
        tile_e = _round_up((e128 + 1) // 2, 128)
    chunk_e = max(128, min(_round_up(chunk_e, 128), tile_e))
    tile_e = _round_up(tile_e, chunk_e)
    e_pad = _round_up(e128, tile_e)
    return e_pad, tile_e, chunk_e


def _mlp_edge_gather_kernel(src_ref, dst_ref, p_src_ref, p_dst_ref,
                            b1_ref, w2_ref, out_ref, *, chunk_e, n_pad):
    # src/dst: (1, TE) int32   -- edge endpoint ids, edges on the lane axis
    # p_src/p_dst: (F, Np) f32 -- W1-projected node tables, VMEM-resident
    # b1: (F, 1) f32,  w2: (1, F) f32
    # out: (1, TE) f32         -- lane-dense per-edge scores
    tile_e = src_ref.shape[1]
    num_chunks = tile_e // chunk_e

    p_src = p_src_ref[...]
    p_dst = p_dst_ref[...]
    b1 = b1_ref[...]
    w2 = w2_ref[...]
    # Hoisted out of the chunk loop (broadcast_in_dim is not CSE'd).
    rows = jax.lax.broadcasted_iota(jnp.int32, (n_pad, chunk_e), 0)

    def body(c, carry):
        off = pl.multiple_of(c * chunk_e, chunk_e)
        src = src_ref[:, pl.ds(off, chunk_e)]                       # (1, C)
        dst = dst_ref[:, pl.ds(off, chunk_e)]                       # (1, C)
        # Gather as one-hot matmuls on the (idle) MXU: z = P_src[:, src] + ...
        oh_src = (rows == src).astype(jnp.float32)                  # (Np, C)
        oh_dst = (rows == dst).astype(jnp.float32)                  # (Np, C)
        z = (jnp.dot(p_src, oh_src, preferred_element_type=jnp.float32)
             + jnp.dot(p_dst, oh_dst, preferred_element_type=jnp.float32)
             + b1)                                                  # (F, C)
        a = jnp.maximum(z, 0.0)                                     # ReLU
        score = jnp.dot(w2, a, preferred_element_type=jnp.float32)  # (1, C)
        out_ref[:, pl.ds(off, chunk_e)] = score.astype(out_ref.dtype)
        return carry

    jax.lax.fori_loop(0, num_chunks, body, 0, unroll=True)


def _mlp_edge_stream_kernel(x_ref, w1_ref, b1_ref, w2_ref, out_ref, *, chunk_e):
    # Fallback for huge node tables: stream gathered features.
    # x: (2F, TE) bf16, w1: (F, 2F) bf16, b1: (F,1) f32, w2: (1,F) f32
    tile_e = x_ref.shape[1]
    num_chunks = tile_e // chunk_e

    w1 = w1_ref[...]
    b1 = b1_ref[...]
    w2 = w2_ref[...]

    def body(c, carry):
        off = pl.multiple_of(c * chunk_e, chunk_e)
        x = x_ref[:, pl.ds(off, chunk_e)]                           # (2F, C)
        z = jnp.dot(w1, x, preferred_element_type=jnp.float32) + b1  # (F, C)
        a = jnp.maximum(z, 0.0)
        score = jnp.dot(w2, a, preferred_element_type=jnp.float32)  # (1, C)
        out_ref[:, pl.ds(off, chunk_e)] = score.astype(out_ref.dtype)
        return carry

    jax.lax.fori_loop(0, num_chunks, body, 0, unroll=True)


@functools.partial(jax.jit,
                   static_argnames=("tile_e", "chunk_e", "node_table_bytes"))
def mlp_predictor_scores(h, src_idx, dst_idx, w1, b1, w2, b2, *,
                         tile_e=16384, chunk_e=512,
                         node_table_bytes=8 * 1024 * 1024):
    """Per-edge MLP scores.

    h       : [N, F]  node features
    src_idx : [E]     edge source node ids
    dst_idx : [E]     edge destination node ids
    w1      : [F, 2F] (PyTorch Linear weight layout), b1: [F]
    w2      : [1, F],                                  b2: [1]
    returns : [E]     edge scores (float32)
    """
    n, f = h.shape
    e = src_idx.shape[0]
    e_pad, tile_e, chunk_e = _pick_tiles(e, tile_e, chunk_e)
    grid = (e_pad // tile_e,)

    b1_c = b1.reshape(f, 1).astype(jnp.float32)
    w2_r = w2.reshape(1, f).astype(jnp.float32)
    n_pad = _round_up(n, 8)

    params = pltpu.CompilerParams(dimension_semantics=("parallel",))

    if 2 * f * n_pad * 4 <= node_table_bytes:
        # ---- Path A: indices-only stream; gather fused in-kernel ----------
        # Fold layer 1 into per-node projections (f32).  Padded node columns
        # are zero and never selected (all ids < N).
        p_src = jnp.dot(w1[:, :f], h.T.astype(jnp.float32))         # [F, N]
        p_dst = jnp.dot(w1[:, f:], h.T.astype(jnp.float32))         # [F, N]
        p_src = jnp.pad(p_src, ((0, 0), (0, n_pad - n)))
        p_dst = jnp.pad(p_dst, ((0, 0), (0, n_pad - n)))

        src_p = jnp.pad(src_idx.astype(jnp.int32),
                        (0, e_pad - e)).reshape(1, e_pad)
        dst_p = jnp.pad(dst_idx.astype(jnp.int32),
                        (0, e_pad - e)).reshape(1, e_pad)

        kernel = functools.partial(_mlp_edge_gather_kernel,
                                   chunk_e=chunk_e, n_pad=n_pad)
        out = pl.pallas_call(
            kernel,
            out_shape=jax.ShapeDtypeStruct((1, e_pad), jnp.float32),
            grid_spec=pltpu.PrefetchScalarGridSpec(
                num_scalar_prefetch=0, grid=grid,
                in_specs=[
                    pl.BlockSpec((1, tile_e), lambda i: (0, i)),     # src ids
                    pl.BlockSpec((1, tile_e), lambda i: (0, i)),     # dst ids
                    pl.BlockSpec((f, n_pad), lambda i: (0, 0)),      # P_src
                    pl.BlockSpec((f, n_pad), lambda i: (0, 0)),      # P_dst
                    pl.BlockSpec((f, 1), lambda i: (0, 0)),          # b1
                    pl.BlockSpec((1, f), lambda i: (0, 0)),          # w2 row
                ],
                out_specs=pl.BlockSpec((1, tile_e), lambda i: (0, i)),
            ),
            compiler_params=params,
        )(src_p, dst_p, p_src, p_dst, b1_c, w2_r)
    else:
        # ---- Path B: huge node table -> stream gathered bf16 features -----
        h_t = h.T.astype(jnp.bfloat16)                               # [F, N]
        x_t = jnp.concatenate([jnp.take(h_t, src_idx, axis=1),
                               jnp.take(h_t, dst_idx, axis=1)],
                              axis=0)                                # [2F, E]
        x_t = jnp.pad(x_t, ((0, 0), (0, e_pad - e)))                 # [2F, Ep]
        w1_b = w1.astype(jnp.bfloat16)

        kernel = functools.partial(_mlp_edge_stream_kernel, chunk_e=chunk_e)
        out = pl.pallas_call(
            kernel,
            out_shape=jax.ShapeDtypeStruct((1, e_pad), jnp.float32),
            grid_spec=pltpu.PrefetchScalarGridSpec(
                num_scalar_prefetch=0, grid=grid,
                in_specs=[
                    pl.BlockSpec((2 * f, tile_e), lambda i: (0, i)),  # X^T
                    pl.BlockSpec((f, 2 * f), lambda i: (0, 0)),       # W1
                    pl.BlockSpec((f, 1), lambda i: (0, 0)),           # b1
                    pl.BlockSpec((1, f), lambda i: (0, 0)),           # w2 row
                ],
                out_specs=pl.BlockSpec((1, tile_e), lambda i: (0, i)),
            ),
            compiler_params=params,
        )(x_t, w1_b, b1_c, w2_r)

    # Fold the scalar W2 bias post-kernel, squeeze(1), drop padded edges.
    return out[0, :e] + b2.astype(jnp.float32)[0]


def _reference(h, src_idx, dst_idx, w1, b1, w2, b2):
    cat = jnp.concatenate([h[src_idx], h[dst_idx]], axis=1)          # [E, 2F]
    hid = jnp.maximum(cat @ w1.T + b1, 0.0)                          # [E, F]
    return (hid @ w2.T + b2)[:, 0]                                   # [E]


if __name__ == "__main__":
    h_feats = 32
    num_nodes = 16
    num_edges = 10

    key = jax.random.PRNGKey(0)
    k_h, k_src, k_dst, k_w1, k_b1, k_w2, k_b2 = jax.random.split(key, 7)

    h = jax.random.normal(k_h, (num_nodes, h_feats), dtype=jnp.float32)
    src_idx = jax.random.randint(k_src, (num_edges,), 0, num_nodes)
    dst_idx = jax.random.randint(k_dst, (num_edges,), 0, num_nodes)

    # Deterministic parameter init (PyTorch Linear-style uniform bounds).
    bound1 = 1.0 / (2 * h_feats) ** 0.5
    w1 = jax.random.uniform(k_w1, (h_feats, 2 * h_feats), jnp.float32,
                            -bound1, bound1)
    b1 = jax.random.uniform(k_b1, (h_feats,), jnp.float32, -bound1, bound1)
    bound2 = 1.0 / h_feats ** 0.5
    w2 = jax.random.uniform(k_w2, (1, h_feats), jnp.float32, -bound2, bound2)
    b2 = jax.random.uniform(k_b2, (1,), jnp.float32, -bound2, bound2)

    ref = _reference(h, src_idx, dst_idx, w1, b1, w2, b2)

    # Path A (default): indices-only stream, gather fused in-kernel (f32).
    scores = jax.block_until_ready(
        mlp_predictor_scores(h, src_idx, dst_idx, w1, b1, w2, b2))
    assert scores.shape == (num_edges,)
    assert jnp.allclose(scores, ref, atol=1e-2, rtol=1e-2), (scores, ref)

    # Path B (forced): large-node fallback streaming gathered bf16 features.
    scores_b = jax.block_until_ready(
        mlp_predictor_scores(h, src_idx, dst_idx, w1, b1, w2, b2,
                             node_table_bytes=0))
    assert scores_b.shape == (num_edges,)
    assert jnp.allclose(scores_b, ref, atol=3e-2, rtol=3e-2), (scores_b, ref)

    print("KERNEL_OK")
</pallas_src>

<mosaic_0001>
module attributes {stable_mosaic.version = 11 : i64} {
  func.func @_mlp_edge_gather_kernel(%arg0: i32, %arg1: memref<1x128xi32, #tpu.memory_space<vmem>>, %arg2: memref<1x128xi32, #tpu.memory_space<vmem>>, %arg3: memref<32x16xf32, #tpu.memory_space<vmem>>, %arg4: memref<32x16xf32, #tpu.memory_space<vmem>>, %arg5: memref<32x1xf32, #tpu.memory_space<vmem>>, %arg6: memref<1x32xf32, #tpu.memory_space<vmem>>, %arg7: memref<1x128xf32, #tpu.memory_space<vmem>>) attributes {dimension_semantics = [#tpu.dimension_semantics<parallel>], iteration_bounds = array<i64: 1>, scalar_prefetch = 0 : i64, scratch_operands = 0 : i64, tpu.core_type = #tpu.core_type<tc>, window_params = [{transform_indices = @transform_0, window_bounds = array<i64: 1, 128>}, {transform_indices = @transform_1, window_bounds = array<i64: 1, 128>}, {pipeline_mode = #tpu.pipeline_mode<synchronous>, transform_indices = @transform_2, window_bounds = array<i64: 32, 16>}, {pipeline_mode = #tpu.pipeline_mode<synchronous>, transform_indices = @transform_3, window_bounds = array<i64: 32, 16>}, {pipeline_mode = #tpu.pipeline_mode<synchronous>, transform_indices = @transform_4, window_bounds = array<i64: 32, 1>}, {pipeline_mode = #tpu.pipeline_mode<synchronous>, transform_indices = @transform_5, window_bounds = array<i64: 1, 32>}, {transform_indices = @transform_6, window_bounds = array<i64: 1, 128>}]} {
    %c0 = arith.constant 0 : index
    %c0_0 = arith.constant 0 : index
    %0 = vector.load %arg3[%c0, %c0_0] : memref<32x16xf32, #tpu.memory_space<vmem>>, vector<32x16xf32>
    %c0_1 = arith.constant 0 : index
    %c0_2 = arith.constant 0 : index
    %1 = vector.load %arg4[%c0_1, %c0_2] : memref<32x16xf32, #tpu.memory_space<vmem>>, vector<32x16xf32>
    %c0_3 = arith.constant 0 : index
    %c0_4 = arith.constant 0 : index
    %2 = vector.load %arg5[%c0_3, %c0_4] : memref<32x1xf32, #tpu.memory_space<vmem>>, vector<32x1xf32>
    %c0_5 = arith.constant 0 : index
    %c0_6 = arith.constant 0 : index
    %3 = vector.load %arg6[%c0_5, %c0_6] : memref<1x32xf32, #tpu.memory_space<vmem>>, vector<1x32xf32>
    %4 = tpu.iota {dimensions = array<i32: 0>} : vector<16x128xi32>
    %c0_i32 = arith.constant 0 : i32
    %c128_i32 = arith.constant 128 : i32
    %5 = arith.muli %c0_i32, %c128_i32 : i32
    %6 = tpu.assume_multiple %5, 128 : i32
    %c0_7 = arith.constant 0 : index
    %7 = arith.index_cast %6 : i32 to index
    %8 = vector.load %arg1[%c0_7, %7] : memref<1x128xi32, #tpu.memory_space<vmem>>, vector<1x128xi32>
    %c0_8 = arith.constant 0 : index
    %9 = arith.index_cast %6 : i32 to index
    %10 = vector.load %arg2[%c0_8, %9] : memref<1x128xi32, #tpu.memory_space<vmem>>, vector<1x128xi32>
    %11 = vector.broadcast %8 : vector<1x128xi32> to vector<16x128xi32>
    %12 = arith.cmpi eq, %4, %11 : vector<16x128xi32>
    %13 = arith.extui %12 : vector<16x128xi1> to vector<16x128xi32>
    %14 = arith.sitofp %13 : vector<16x128xi32> to vector<16x128xf32>
    %15 = vector.broadcast %10 : vector<1x128xi32> to vector<16x128xi32>
    %16 = arith.cmpi eq, %4, %15 : vector<16x128xi32>
    %17 = arith.extui %16 : vector<16x128xi1> to vector<16x128xi32>
    %18 = arith.sitofp %17 : vector<16x128xi32> to vector<16x128xf32>
    %cst = arith.constant dense<0.000000e+00> : vector<32x128xf32>
    %19 = tpu.matmul %0, %14, %cst {dimension_numbers = #tpu.dot_dimension_numbers<[1], [0], [0], [1], [0, 0, 1, 1], [], []>} : vector<32x16xf32>, vector<16x128xf32>, vector<32x128xf32> -> vector<32x128xf32>
    %cst_9 = arith.constant dense<0.000000e+00> : vector<32x128xf32>
    %20 = tpu.matmul %1, %18, %cst_9 {dimension_numbers = #tpu.dot_dimension_numbers<[1], [0], [0], [1], [0, 0, 1, 1], [], []>} : vector<32x16xf32>, vector<16x128xf32>, vector<32x128xf32> -> vector<32x128xf32>
    %21 = arith.addf %19, %20 : vector<32x128xf32>
    %22 = vector.broadcast %2 : vector<32x1xf32> to vector<32x128xf32>
    %23 = arith.addf %21, %22 : vector<32x128xf32>
    %cst_10 = arith.constant 0.000000e+00 : f32
    %24 = vector.broadcast %cst_10 : f32 to vector<32x128xf32>
    %25 = arith.maximumf %23, %24 : vector<32x128xf32>
    %cst_11 = arith.constant dense<0.000000e+00> : vector<1x128xf32>
    %26 = tpu.matmul %3, %25, %cst_11 {dimension_numbers = #tpu.dot_dimension_numbers<[1], [0], [0], [1], [0, 0, 1, 1], [], []>} : vector<1x32xf32>, vector<32x128xf32>, vector<1x128xf32> -> vector<1x128xf32>
    %c0_12 = arith.constant 0 : index
    %27 = arith.index_cast %6 : i32 to index
    %28 = vector.load %arg7[%c0_12, %27] : memref<1x128xf32, #tpu.memory_space<vmem>>, vector<1x128xf32>
    tpu.vector_store %arg7[%c0_12, %27], %26 {strides = array<i32>} : memref<1x128xf32, #tpu.memory_space<vmem>>, vector<1x128xf32>,
    %c1_i32 = arith.constant 1 : i32
    return
  }
  func.func @transform_0(%arg0: i32) -> (i32, i32) {
    %c0_i32 = arith.constant 0 : i32
    %c0_i32_0 = arith.constant 0 : i32
    return %c0_i32, %arg0 : i32, i32
  }
  func.func @transform_1(%arg0: i32) -> (i32, i32) {
    %c0_i32 = arith.constant 0 : i32
    %c0_i32_0 = arith.constant 0 : i32
    return %c0_i32, %arg0 : i32, i32
  }
  func.func @transform_2(%arg0: i32) -> (i32, i32) {
    %c0_i32 = arith.constant 0 : i32
    %c0_i32_0 = arith.constant 0 : i32
    %c0_i32_1 = arith.constant 0 : i32
    return %c0_i32, %c0_i32_0 : i32, i32
  }
  func.func @transform_3(%arg0: i32) -> (i32, i32) {
    %c0_i32 = arith.constant 0 : i32
    %c0_i32_0 = arith.constant 0 : i32
    %c0_i32_1 = arith.constant 0 : i32
    return %c0_i32, %c0_i32_0 : i32, i32
  }
  func.func @transform_4(%arg0: i32) -> (i32, i32) {
    %c0_i32 = arith.constant 0 : i32
    %c0_i32_0 = arith.constant 0 : i32
    %c0_i32_1 = arith.constant 0 : i32
    return %c0_i32, %c0_i32_0 : i32, i32
  }
  func.func @transform_5(%arg0: i32) -> (i32, i32) {
    %c0_i32 = arith.constant 0 : i32
    %c0_i32_0 = arith.constant 0 : i32
    %c0_i32_1 = arith.constant 0 : i32
    return %c0_i32, %c0_i32_0 : i32, i32
  }
  func.func @transform_6(%arg0: i32) -> (i32, i32) {
    %c0_i32 = arith.constant 0 : i32
    %c0_i32_0 = arith.constant 0 : i32
    return %c0_i32, %arg0 : i32, i32
  }
}

</mosaic_0001>

<llo_original>
// kernel: mlp_predictor_scores.1
$region0: #{mlp_predictor_scores.1}
  #allocation0 [shape = 'u32[]', space=smem, size = 0x4, offset = 0x4, fixed_abs, tag = 'smem constant byte address 0x4 - core index']
  #allocation1 [shape = 'u32[144,128]{1,0:T(1,128)}', space=vmem, size = 0x12000, scoped, tag = 'internal scratch']
  %s0 = inlined_call_operand.vmem [shape: s32[1,128], index: 0, kind: input, shape index: {}]
  %s1 = inlined_call_operand.vmem [shape: s32[1,128], index: 1, kind: input, shape index: {}]
  %s2 = inlined_call_operand.vmem [shape: f32[32,16], index: 2, kind: input, shape index: {}]
  %s3 = inlined_call_operand.vmem [shape: f32[32,16], index: 3, kind: input, shape index: {}]
  %s4 = inlined_call_operand.vmem [shape: f32[32,1], index: 4, kind: input, shape index: {}]
  %s5 = inlined_call_operand.vmem [shape: f32[1,32], index: 5, kind: input, shape index: {}]
  %s6 = inlined_call_operand.vmem [shape: f32[1,128], index: 6, kind: output, shape index: {}]
  %s7 = sld [smem:[#allocation0]]
  $region34: #{mlp_predictor_scores.1} parent=0
    _
  %s9 = ssub.s32 1, %s7
  %s10 = scalar_select 0, %s9, %s7
  // Predicated region
  $region2: #{mlp_predictor_scores.1} parent=0 // pred_check
    _
  $region3: #{mlp_predictor_scores.1} parent=0 // pred_check_branch
    %12 = sbr.rel (0) target = $region5
  $region4: #{mlp_predictor_scores.1} parent=0 // pred_region
    _
  $region5: #{mlp_predictor_scores.1} parent=0 // pred_fallthru
    _
  // Predicated region
  $region6: #{mlp_predictor_scores.1} parent=0 // pred_check
    _
  $region7: #{mlp_predictor_scores.1} parent=0 // pred_check_branch
    %14 = sbr.rel (0) target = $region9
  $region8: #{mlp_predictor_scores.1} parent=0 // pred_region
    _
  $region9: #{mlp_predictor_scores.1} parent=0 // pred_fallthru
    _
  // Predicated region
  $region10: #{mlp_predictor_scores.1} parent=0 // pred_check
    _
  $region11: #{mlp_predictor_scores.1} parent=0 // pred_check_branch
    %16 = sbr.rel (0) target = $region13
  $region12: #{mlp_predictor_scores.1} parent=0 // pred_region
    _
  $region13: #{mlp_predictor_scores.1} parent=0 // pred_fallthru
    _
  // Predicated region
  $region14: #{mlp_predictor_scores.1} parent=0 // pred_check
    _
  $region15: #{mlp_predictor_scores.1} parent=0 // pred_check_branch
    %18 = sbr.rel (0) target = $region17
  $region16: #{mlp_predictor_scores.1} parent=0 // pred_region
    _
  $region17: #{mlp_predictor_scores.1} parent=0 // pred_fallthru
    _
  // Predicated region
  $region18: #{mlp_predictor_scores.1} parent=0 // pred_check
    _
  $region19: #{mlp_predictor_scores.1} parent=0 // pred_check_branch
    %20 = sbr.rel (0) target = $region21
  $region20: #{mlp_predictor_scores.1} parent=0 // pred_region
    _
  $region21: #{mlp_predictor_scores.1} parent=0 // pred_fallthru
    _
  // Predicated region
  $region22: #{mlp_predictor_scores.1} parent=0 // pred_check
    _
  $region23: #{mlp_predictor_scores.1} parent=0 // pred_check_branch
    %22 = sbr.rel (0) target = $region25
  $region24: #{mlp_predictor_scores.1} parent=0 // pred_region
    _
  $region25: #{mlp_predictor_scores.1} parent=0 // pred_fallthru
    _
  %v23 = vld [vmem:[%s2] sm:$0xff]
  %v24 = vld [vmem:[%s2 + $0x8] sm:$0xff]
  %v25 = vld [vmem:[%s2 + $0x10] sm:$0xff]
  %v26 = vld [vmem:[%s2 + $0x18] sm:$0xff]
  %v27 = vld [vmem:[%s3] sm:$0xff]
  %v28 = vld [vmem:[%s3 + $0x8] sm:$0xff]
  %v29 = vld [vmem:[%s3 + $0x10] sm:$0xff]
  %v30 = vld [vmem:[%s3 + $0x18] sm:$0xff]
  %v31 = vld [vmem:[%s4] sm:$0xff]
  %v32 = vld [vmem:[%s4 + $0x8] sm:$0xff]
  %v33 = vld [vmem:[%s4 + $0x10] sm:$0xff]
  %v34 = vld [vmem:[%s4 + $0x18] sm:$0xff]
  %v35 = vld [vmem:[%s5] sm:$0x1]
  %v36 = vlaneseq
  %v37 = vshrl.u32 %v36, 7
  %v38 = vadd.s32 %v37, 8
  %v39 = vld [vmem:[%s0] sm:$0x1]
  %v40 = vld [vmem:[%s1] sm:$0x1]
  %v41 = vlaneseq
  %v42 = vshrl.u32 %v41, 7
  %v43 = vsub.s32 0, %v42
  %v44 = vrot.slane %v39, %v43
  %vm45 = vcmp.eq.s32.totalorder %v37, %v44
  %vm46 = vcmp.eq.s32.totalorder %v38, %v44
  %v47 = vsel %vm45, 1, 0
  %v48 = vsel %vm46, 1, 0
  %v49 = vcvt.s32.f32 %v47
  %v50 = vcvt.s32.f32 %v48
  %v51 = vlaneseq
  %v52 = vshrl.u32 %v51, 7
  %v53 = vsub.s32 0, %v52
  %v54 = vrot.slane %v40, %v53
  %vm55 = vcmp.eq.s32.totalorder %v37, %v54
  %vm56 = vcmp.eq.s32.totalorder %v38, %v54
  %v57 = vsel %vm55, 1, 0
  %v58 = vsel %vm56, 1, 0
  %v59 = vcvt.s32.f32 %v57
  %v60 = vcvt.s32.f32 %v58
  %vm61 = vcmask 130048
  %v63 = vsel %vm61, %v27, 0
  %v66 = vsel %vm61, %v28, 0
  %v69 = vsel %vm61, %v29, 0
  %v72 = vsel %vm61, %v30, 0
  %74 = vmatprep.subr.mxu0 0.0
  %75 = vmatpush1.msra.mxu0 %v59
  %76 = vmatprep.subr.mxu0 0.0
  %77 = vmatpush1.msra.mxu0 %v60
  %78 = vmatprep.subr.mxu0 0.0
  %79 = vmatpush1.msra.mxu0 0.0
  %80 = vmatprep.subr.mxu0 0.0
  %81 = vmatpush1.msra.mxu0 0.0
  %82 = vmatprep.subr.mxu0 0.0
  %83 = vmatpush1.msra.mxu0 0.0
  %84 = vmatprep.subr.mxu0 0.0
  %85 = vmatpush1.msra.mxu0 0.0
  %86 = vmatprep.subr.mxu0 0.0
  %87 = vmatpush1.msra.mxu0 0.0
  %88 = vmatprep.subr.mxu0 0.0
  %89 = vmatpush1.msra.mxu0 0.0
  %90 = vmatprep.subr.mxu0 0.0
  %91 = vmatpush1.msra.mxu0 0.0
  %92 = vmatprep.subr.mxu0 0.0
  %93 = vmatpush1.msra.mxu0 0.0
  %94 = vmatprep.subr.mxu0 0.0
  %95 = vmatpush1.msra.mxu0 0.0
  %96 = vmatprep.subr.mxu0 0.0
  %97 = vmatpush1.msra.mxu0 0.0
  %98 = vmatprep.subr.mxu0 0.0
  %99 = vmatpush1.msra.mxu0 0.0
  %100 = vmatprep.subr.mxu0 0.0
  %101 = vmatpush1.msra.mxu0 0.0
  %102 = vmatprep.subr.mxu0 0.0
  %103 = vmatpush1.msra.mxu0 0.0
  %104 = vmatprep.subr.mxu0 0.0
  %105 = vmatpush1.msra.mxu0 0.0
  %106 = vmatprep.subr.mxu0 0.0
  %107 = vmatpush1.msra.mxu0 0.0
  %108 = vmatprep.subr.mxu0 0.0
  %109 = vmatpush1.msra.mxu0 0.0
  %110 = vmatprep.subr.mxu0 0.0
  %111 = vmatpush1.msra.mxu0 0.0
  %112 = vmatprep.subr.mxu0 0.0
  %113 = vmatpush1.msra.mxu0 0.0
  %114 = vmatprep.subr.mxu0 0.0
  %115 = vmatpush1.msra.mxu0 0.0
  %116 = vmatprep.subr.mxu0 0.0
  %117 = vmatpush1.msra.mxu0 0.0
  %118 = vmatprep.subr.mxu0 0.0
  %119 = vmatpush1.msra.mxu0 0.0
  %120 = vmatprep.subr.mxu0 0.0
  %121 = vmatpush1.msra.mxu0 0.0
  %122 = vmatprep.subr.mxu0 0.0
  %123 = vmatpush1.msra.mxu0 0.0
  %124 = vmatprep.subr.mxu0 0.0
  %125 = vmatpush1.msra.mxu0 0.0
  %126 = vmatprep.subr.mxu0 0.0
  %127 = vmatpush1.msra.mxu0 0.0
  %128 = vmatprep.subr.mxu0 0.0
  %129 = vmatpush1.msra.mxu0 0.0
  %130 = vmatprep.subr.mxu0 0.0
  %131 = vmatpush1.msra.mxu0 0.0
  %132 = vmatprep.subr.mxu0 0.0
  %133 = vmatpush1.msra.mxu0 0.0
  %134 = vmatprep.subr.mxu0 0.0
  %135 = vmatpush1.msra.mxu0 0.0
  %136 = vmatprep.subr.mxu0 0.0
  %137 = vmatpush1.msra.mxu0 0.0
  %138 = vmatprep.mubr.f32.mxu0 0.0
  %139 = vmatmul.mubr.f32.gmra.mrb[0].mxu0 %v63
  %v140 = vpop.f32.mrb[0].mxu0
  %v141 = vadd.f32 0.0, %v140
  %v142 = vpop.f32.mrb[0].mxu0
  %143 = vmatprep.mubr.f32.mxu0 0.0
  %144 = vmatmul.mubr.f32.gmra.mrb[0].mxu0 %v66
  %v145 = vpop.f32.mrb[0].mxu0
  %v146 = vadd.f32 0.0, %v145
  %v147 = vpop.f32.mrb[0].mxu0
  %148 = vmatprep.mubr.f32.mxu0 0.0
  %149 = vmatmul.mubr.f32.gmra.mrb[0].mxu0 %v69
  %v150 = vpop.f32.mrb[0].mxu0
  %v151 = vadd.f32 0.0, %v150
  %v152 = vpop.f32.mrb[0].mxu0
  %153 = vmatprep.mubr.f32.mxu0 0.0
  %154 = vmatmul.mubr.f32.gmra.mrb[0].mxu0 %v72
  %v155 = vpop.f32.mrb[0].mxu0
  %v156 = vadd.f32 0.0, %v155
  %v157 = vpop.f32.mrb[0].mxu0
  %158 = vdwg.mxu0
  %v160 = vsel %vm61, %v23, 0
  %v163 = vsel %vm61, %v24, 0
  %v166 = vsel %vm61, %v25, 0
  %v169 = vsel %vm61, %v26, 0
  %171 = vmatprep.subr.mxu0 0.0
  %172 = vmatpush1.msra.mxu0 %v49
  %173 = vmatprep.subr.mxu0 0.0
  %174 = vmatpush1.msra.mxu0 %v50
  %175 = vmatprep.subr.mxu0 0.0
  %176 = vmatpush1.msra.mxu0 0.0
  %177 = vmatprep.subr.mxu0 0.0
  %178 = vmatpush1.msra.mxu0 0.0
  %179 = vmatprep.subr.mxu0 0.0
  %180 = vmatpush1.msra.mxu0 0.0
  %181 = vmatprep.subr.mxu0 0.0
  %182 = vmatpush1.msra.mxu0 0.0
  %183 = vmatprep.subr.mxu0 0.0
  %184 = vmatpush1.msra.mxu0 0.0
  %185 = vmatprep.subr.mxu0 0.0
  %186 = vmatpush1.msra.mxu0 0.0
  %187 = vmatprep.subr.mxu0 0.0
  %188 = vmatpush1.msra.mxu0 0.0
  %189 = vmatprep.subr.mxu0 0.0
  %190 = vmatpush1.msra.mxu0 0.0
  %191 = vmatprep.subr.mxu0 0.0
  %192 = vmatpush1.msra.mxu0 0.0
  %193 = vmatprep.subr.mxu0 0.0
  %194 = vmatpush1.msra.mxu0 0.0
  %195 = vmatprep.subr.mxu0 0.0
  %196 = vmatpush1.msra.mxu0 0.0
  %197 = vmatprep.subr.mxu0 0.0
  %198 = vmatpush1.msra.mxu0 0.0
  %199 = vmatprep.subr.mxu0 0.0
  %200 = vmatpush1.msra.mxu0 0.0
  %201 = vmatprep.subr.mxu0 0.0
  %202 = vmatpush1.msra.mxu0 0.0
  %203 = vmatprep.subr.mxu0 0.0
  %204 = vmatpush1.msra.mxu0 0.0
  %205 = vmatprep.subr.mxu0 0.0
  %206 = vmatpush1.msra.mxu0 0.0
  %207 = vmatprep.subr.mxu0 0.0
  %208 = vmatpush1.msra.mxu0 0.0
  %209 = vmatprep.subr.mxu0 0.0
  %210 = vmatpush1.msra.mxu0 0.0
  %211 = vmatprep.subr.mxu0 0.0
  %212 = vmatpush1.msra.mxu0 0.0
  %213 = vmatprep.subr.mxu0 0.0
  %214 = vmatpush1.msra.mxu0 0.0
  %215 = vmatprep.subr.mxu0 0.0
  %216 = vmatpush1.msra.mxu0 0.0
  %217 = vmatprep.subr.mxu0 0.0
  %218 = vmatpush1.msra.mxu0 0.0
  %219 = vmatprep.subr.mxu0 0.0
  %220 = vmatpush1.msra.mxu0 0.0
  %221 = vmatprep.subr.mxu0 0.0
  %222 = vmatpush1.msra.mxu0 0.0
  %223 = vmatprep.subr.mxu0 0.0
  %224 = vmatpush1.msra.mxu0 0.0
  %225 = vmatprep.subr.mxu0 0.0
  %226 = vmatpush1.msra.mxu0 0.0
  %227 = vmatprep.subr.mxu0 0.0
  %228 = vmatpush1.msra.mxu0 0.0
  %229 = vmatprep.subr.mxu0 0.0
  %230 = vmatpush1.msra.mxu0 0.0
  %231 = vmatprep.subr.mxu0 0.0
  %232 = vmatpush1.msra.mxu0 0.0
  %233 = vmatprep.subr.mxu0 0.0
  %234 = vmatpush1.msra.mxu0 0.0
  %235 = vmatprep.mubr.f32.mxu0 0.0
  %236 = vmatmul.mubr.f32.gmra.mrb[0].mxu0 %v160
  %v237 = vpop.f32.mrb[0].mxu0
  %v238 = vadd.f32 %v141, %v237
  %v239 = vpop.f32.mrb[0].mxu0
  %240 = vmatprep.mubr.f32.mxu0 0.0
  %241 = vmatmul.mubr.f32.gmra.mrb[0].mxu0 %v163
  %v242 = vpop.f32.mrb[0].mxu0
  %v243 = vadd.f32 %v146, %v242
  %v244 = vpop.f32.mrb[0].mxu0
  %245 = vmatprep.mubr.f32.mxu0 0.0
  %246 = vmatmul.mubr.f32.gmra.mrb[0].mxu0 %v166
  %v247 = vpop.f32.mrb[0].mxu0
  %v248 = vadd.f32 %v151, %v247
  %v249 = vpop.f32.mrb[0].mxu0
  %250 = vmatprep.mubr.f32.mxu0 0.0
  %251 = vmatmul.mubr.f32.gmra.mrb[0].mxu0 %v169
  %v252 = vpop.f32.mrb[0].mxu0
  %v253 = vadd.f32 %v156, %v252
  %v254 = vpop.f32.mrb[0].mxu0
  %255 = vdwg.mxu0
  %257 = vset.pattern.permute.xlu0 0
  %258 = vperm.xlu0 %257, %v31
  %v259 = vpop.permute.xlu0 %258
  %262 = vset.pattern.permute.xlu0 0
  %263 = vperm.xlu0 %262, %v32
  %v264 = vpop.permute.xlu0 %263
  %267 = vset.pattern.permute.xlu0 0
  %268 = vperm.xlu0 %267, %v33
  %v269 = vpop.permute.xlu0 %268
  %272 = vset.pattern.permute.xlu0 0
  %273 = vperm.xlu0 %272, %v34
  %v274 = vpop.permute.xlu0 %273
  %v276 = vadd.f32 %v238, %v259
  %v277 = vadd.f32 %v243, %v264
  %v278 = vadd.f32 %v248, %v269
  %v279 = vadd.f32 %v253, %v274
  %v280 = vmax.f32 %v276, 0.0
  %v281 = vmax.f32 %v277, 0.0
  %v282 = vmax.f32 %v278, 0.0
  %v283 = vmax.f32 %v279, 0.0
  %vm284 = vcmask 261120
  %v286 = vsel %vm284, %v35, 0
  %288 = vmatprep.subr.mxu0 0.0
  %289 = vmatpush1.msra.mxu0 %v280
  %290 = vmatprep.subr.mxu0 0.0
  %291 = vmatpush1.msra.mxu0 %v281
  %292 = vmatprep.subr.mxu0 0.0
  %293 = vmatpush1.msra.mxu0 %v282
  %294 = vmatprep.subr.mxu0 0.0
  %295 = vmatpush1.msra.mxu0 %v283
  %296 = vmatprep.subr.mxu0 0.0
  %297 = vmatpush1.msra.mxu0 0.0
  %298 = vmatprep.subr.mxu0 0.0
  %299 = vmatpush1.msra.mxu0 0.0
  %300 = vmatprep.subr.mxu0 0.0
  %301 = vmatpush1.msra.mxu0 0.0
  %302 = vmatprep.subr.mxu0 0.0
  %303 = vmatpush1.msra.mxu0 0.0
  %304 = vmatprep.subr.mxu0 0.0
  %305 = vmatpush1.msra.mxu0 0.0
  %306 = vmatprep.subr.mxu0 0.0
  %307 = vmatpush1.msra.mxu0 0.0
  %308 = vmatprep.subr.mxu0 0.0
  %309 = vmatpush1.msra.mxu0 0.0
  %310 = vmatprep.subr.mxu0 0.0
  %311 = vmatpush1.msra.mxu0 0.0
  %312 = vmatprep.subr.mxu0 0.0
  %313 = vmatpush1.msra.mxu0 0.0
  %314 = vmatprep.subr.mxu0 0.0
  %315 = vmatpush1.msra.mxu0 0.0
  %316 = vmatprep.subr.mxu0 0.0
  %317 = vmatpush1.msra.mxu0 0.0
  %318 = vmatprep.subr.mxu0 0.0
  %319 = vmatpush1.msra.mxu0 0.0
  %320 = vmatprep.subr.mxu0 0.0
  %321 = vmatpush1.msra.mxu0 0.0
  %322 = vmatprep.subr.mxu0 0.0
  %323 = vmatpush1.msra.mxu0 0.0
  %324 = vmatprep.subr.mxu0 0.0
  %325 = vmatpush1.msra.mxu0 0.0
  %326 = vmatprep.subr.mxu0 0.0
  %327 = vmatpush1.msra.mxu0 0.0
  %328 = vmatprep.subr.mxu0 0.0
  %329 = vmatpush1.msra.mxu0 0.0
  %330 = vmatprep.subr.mxu0 0.0
  %331 = vmatpush1.msra.mxu0 0.0
  %332 = vmatprep.subr.mxu0 0.0
  %333 = vmatpush1.msra.mxu0 0.0
  %334 = vmatprep.subr.mxu0 0.0
  %335 = vmatpush1.msra.mxu0 0.0
  %336 = vmatprep.subr.mxu0 0.0
  %337 = vmatpush1.msra.mxu0 0.0
  %338 = vmatprep.subr.mxu0 0.0
  %339 = vmatpush1.msra.mxu0 0.0
  %340 = vmatprep.subr.mxu0 0.0
  %341 = vmatpush1.msra.mxu0 0.0
  %342 = vmatprep.subr.mxu0 0.0
  %343 = vmatpush1.msra.mxu0 0.0
  %344 = vmatprep.subr.mxu0 0.0
  %345 = vmatpush1.msra.mxu0 0.0
  %346 = vmatprep.subr.mxu0 0.0
  %347 = vmatpush1.msra.mxu0 0.0
  %348 = vmatprep.subr.mxu0 0.0
  %349 = vmatpush1.msra.mxu0 0.0
  %350 = vmatprep.subr.mxu0 0.0
  %351 = vmatpush1.msra.mxu0 0.0
  %352 = vmatprep.mubr.f32.mxu0 0.0
  %353 = vmatmul.mubr.f32.gmra.mrb[0].mxu0 %v286
  %v354 = vpop.f32.mrb[0].mxu0
  %v355 = vadd.f32 0.0, %v354
  %v356 = vpop.f32.mrb[0].mxu0
  %357 = vdwg.mxu0
  %358 = vst [vmem:[%s6] sm:$0x1] %v355
  // Predicated region
  $region26: #{mlp_predictor_scores.1} parent=0 // pred_check
    _
  $region27: #{mlp_predictor_scores.1} parent=0 // pred_check_branch
    %360 = sbr.rel (0) target = $region29
  $region28: #{mlp_predictor_scores.1} parent=0 // pred_region
    _
  $region29: #{mlp_predictor_scores.1} parent=0 // pred_fallthru
    _
  // Predicated region
  $region30: #{mlp_predictor_scores.1} parent=0 // pred_check
    _
  $region31: #{mlp_predictor_scores.1} parent=0 // pred_check_branch
    %362 = sbr.rel (0) target = $region33
  $region32: #{mlp_predictor_scores.1} parent=0 // pred_region
    _
  $region33: #{mlp_predictor_scores.1} parent=0 // pred_fallthru
    _

</llo_original>
